<compile_context>
chip_gen: v7x
topology: tpu7x:2x2x1
jax: 0.10.0
libtpu: 0.0.40
codegen_flags: <defaults>
</compile_context>

<pallas_src>
import functools

import jax
import jax.numpy as jnp
from jax.experimental import pallas as pl
from jax.experimental.pallas import tpu as pltpu


def _cross_w_allreduce(ssq, w, c):
    """Sum over the W groups folded into the lane axis, broadcast back.

    ssq: (1, W*C) f32 with lane index = w*C + c'.  Returns T with
    T[:, w'*C + c'] = sum_w ssq[:, w*C + c'] for every w'.  Uses a binary
    decomposition of W so only ~2*log2(W) circular XLU rolls are needed,
    for any W (power of two or not).
    """
    span = ssq          # running sum over shifts [0, cur) (units of C lanes)
    cur = 1
    total = None
    offset = 0
    rem = w
    while rem > 0:
        if rem & 1:
            contrib = span if offset == 0 else pltpu.roll(span, offset * c, axis=1)
            total = contrib if total is None else total + contrib
            offset += cur
        rem >>= 1
        if rem:
            span = span + pltpu.roll(span, cur * c, axis=1)
            cur *= 2
    return total


def _grn_kernel(gb_ref, x_ref, o_ref, *, w, c, chunk_rows, apply_dtype,
                single_pass):
    """Processes `nb` images per grid step.

    gb_ref: (2, W*C)  -- row 0 = gamma tiled W times, row 1 = beta tiled.
    x_ref / o_ref: (nb, H, W*C)  -- W folded into the lane axis (lane-dense).
    """
    nb, h, wc = x_ref.shape
    n_chunks = h // chunk_rows
    unroll = n_chunks if n_chunks <= 8 else 8

    # gamma/beta are grid-resident; hoist loads/casts out of the image loop.
    gamma_t = gb_ref[0:1, :].astype(jnp.float32)             # (1, W*C)
    beta_t = gb_ref[1:2, :].astype(jnp.float32)
    b_t = beta_t.astype(apply_dtype)                         # (1, W*C)
    if not single_pass:
        # Hoist the sublane broadcast out of the per-chunk apply loop.
        b_b = jnp.broadcast_to(b_t, (chunk_rows, wc))

    for ib in range(nb):                                     # nb is small & static
        if single_pass:
            # Whole image fits in a handful of vregs: load once, reduce, apply.
            xf = x_ref[ib].astype(jnp.float32)               # (H, W*C)
            ssq = jnp.sum(xf * xf, axis=0, keepdims=True)    # one XLU reduce
        else:
            # Pass 1: VPU-only accumulation; single cross-sublane reduce after.
            def ssq_body(i, acc):
                r0 = pl.multiple_of(i * chunk_rows, chunk_rows)
                xc = x_ref[ib, pl.ds(r0, chunk_rows), :].astype(jnp.float32)
                return acc + xc * xc

            acc = jax.lax.fori_loop(
                0, n_chunks, ssq_body,
                jnp.zeros((chunk_rows, wc), jnp.float32), unroll=unroll)
            ssq = jnp.sum(acc, axis=0, keepdims=True)

        # Cross-W reduction + broadcast back to the W-tiled lane layout.
        ssq = _cross_w_allreduce(ssq, w, c)

        gx = jnp.sqrt(ssq)                                    # (1, W*C)
        # Each channel's Gx appears W times, so sum/(W*C) == mean over channels.
        mean = jnp.sum(gx, axis=-1, keepdims=True) * (1.0 / wc)
        inv = 1.0 / (mean + 1e-6)                             # exact; off crit path

        # out = gamma*(x*Nx) + beta + x  ==  x * (gamma*Nx + 1) + beta
        s_t = (gamma_t * gx * inv + 1.0).astype(apply_dtype)  # (1, W*C)

        if single_pass:
            out = xf.astype(apply_dtype) * s_t + b_t
            o_ref[ib] = out.astype(o_ref.dtype)
        else:
            s_b = jnp.broadcast_to(s_t, (chunk_rows, wc))     # hoisted: once/image

            def apply_body(i, carry):
                r0 = pl.multiple_of(i * chunk_rows, chunk_rows)
                xc = x_ref[ib, pl.ds(r0, chunk_rows), :].astype(apply_dtype)
                o_ref[ib, pl.ds(r0, chunk_rows), :] = (
                    xc * s_b + b_b).astype(o_ref.dtype)
                return carry

            jax.lax.fori_loop(0, n_chunks, apply_body, 0, unroll=unroll)


def _choose_nb(n, image_bytes, target_bytes=1 << 20, max_nb=32):
    """Largest divisor of n giving a block <= target_bytes, keeping >=2 grid steps."""
    best = 1
    for d in range(1, min(n, max_nb) + 1):
        if n % d:
            continue
        if d * image_bytes > target_bytes:
            continue
        if n >= 2 and n // d < 2:
            continue   # keep >= 2 grid steps so both v7x TensorCores get work
        best = d
    return best


def grn(x, gamma, beta):
    """ConvNeXt-V2 GRN.  x: (N, H, W, C); gamma, beta: (C,). Same shape/dtype out."""
    n, h, w, c = x.shape
    wc = w * c
    assert wc % 128 == 0, "W*C must be lane-dense (multiple of 128)"

    # Fold W into the lane axis and pre-tile gamma/beta (one merged DMA).
    x3 = x.reshape(n, h, wc)
    gb = jnp.stack(
        [jnp.tile(gamma.reshape(-1), w), jnp.tile(beta.reshape(-1), w)], axis=0
    ).astype(jnp.float32)

    kind = ""
    try:
        kind = jax.devices()[0].device_kind.lower()
    except Exception:
        pass
    is_v5 = "v5" in kind

    if x.dtype == jnp.bfloat16:
        # bf16 VALU exists on v6e/v7x; on v5e a bf16 apply only adds converts.
        apply_dtype = jnp.float32 if is_v5 else jnp.bfloat16
        chunk_rows = 16 if h % 16 == 0 else (8 if h % 8 == 0 else h)
    else:
        apply_dtype = jnp.float32
        chunk_rows = 8 if h % 8 == 0 else h

    elem = jnp.dtype(x.dtype).itemsize
    image_bytes = h * wc * elem
    nb = _choose_nb(n, image_bytes)
    grid = (n // nb,)

    # Whole-image-in-vregs path only when the f32 working set is tiny.
    single_pass = (h * wc * 4) <= 64 * 1024

    block_bytes = nb * image_bytes
    # Budget: double-buffered in + out blocks plus gamma/beta and slack.
    vmem_limit = int(min(64 << 20, max(32 << 20, 5 * block_bytes + (2 << 20))))

    kernel = functools.partial(
        _grn_kernel, w=w, c=c, chunk_rows=chunk_rows,
        apply_dtype=apply_dtype, single_pass=single_pass)

    out3 = pl.pallas_call(
        kernel,
        out_shape=jax.ShapeDtypeStruct((n, h, wc), x.dtype),
        grid=grid,
        in_specs=[
            pl.BlockSpec((2, wc), lambda i: (0, 0)),           # gamma/beta (resident)
            pl.BlockSpec((nb, h, wc), lambda i: (i, 0, 0)),    # nb images per step
        ],
        out_specs=pl.BlockSpec((nb, h, wc), lambda i: (i, 0, 0)),
        compiler_params=pltpu.CompilerParams(
            dimension_semantics=("parallel",),
            vmem_limit_bytes=vmem_limit,
        ),
    )(gb, x3)

    return out3.reshape(n, h, w, c)


def grn_reference(x, gamma, beta):
    xf = x.astype(jnp.float32)
    gx = jnp.sqrt(jnp.sum(xf * xf, axis=(1, 2), keepdims=True))
    nx = gx / (jnp.mean(gx, axis=-1, keepdims=True) + 1e-6)
    g = gamma.reshape(1, 1, 1, -1).astype(jnp.float32)
    b = beta.reshape(1, 1, 1, -1).astype(jnp.float32)
    return (g * (xf * nx) + b + xf).astype(x.dtype)


if __name__ == "__main__":
    key = jax.random.PRNGKey(0)
    k_x, k_g, k_b, k_x2 = jax.random.split(key, 4)

    N, H, W, C = 2, 16, 16, 32  # small NHWC shapes; C = `dim` of the GRN layer
    x = jax.random.normal(k_x, (N, H, W, C), dtype=jnp.float32)
    # Module __init__ uses zeros(1,1,1,dim); use random values so the
    # gamma/beta path is actually exercised.
    gamma = jax.random.normal(k_g, (C,), dtype=jnp.float32) * 0.1
    beta = jax.random.normal(k_b, (C,), dtype=jnp.float32) * 0.1

    # Case 1: tiny images -> single-pass path, nb=1, grid=(2,)
    out = jax.block_until_ready(grn(x, gamma, beta))
    ref = grn_reference(x, gamma, beta)
    assert out.shape == (N, H, W, C)
    assert jnp.allclose(out, ref, atol=1e-4, rtol=1e-4), "case 1 mismatch"

    # Case 2: taller images -> chunked two-pass path, nb=2 images per grid step
    N2, H2 = 4, 64
    x2 = jax.random.normal(k_x2, (N2, H2, W, C), dtype=jnp.float32)
    out2 = jax.block_until_ready(grn(x2, gamma, beta))
    ref2 = grn_reference(x2, gamma, beta)
    assert out2.shape == (N2, H2, W, C)
    assert jnp.allclose(out2, ref2, atol=1e-4, rtol=1e-4), "case 2 mismatch"

    print("KERNEL_OK")
</pallas_src>

<mosaic_0001>
module attributes {stable_mosaic.version = 11 : i64} {
  func.func @_grn_kernel(%arg0: i32, %arg1: memref<2x512xf32, #tpu.memory_space<vmem>>, %arg2: memref<1x16x512xf32, #tpu.memory_space<vmem>>, %arg3: memref<1x16x512xf32, #tpu.memory_space<vmem>>) attributes {dimension_semantics = [#tpu.dimension_semantics<parallel>], iteration_bounds = array<i64: 2>, scalar_prefetch = 0 : i64, scratch_operands = 0 : i64, tpu.core_type = #tpu.core_type<tc>, window_params = [{pipeline_mode = #tpu.pipeline_mode<synchronous>, transform_indices = @transform_0, window_bounds = array<i64: 2, 512>}, {transform_indices = @transform_1, window_bounds = array<i64: 1, 16, 512>}, {transform_indices = @transform_2, window_bounds = array<i64: 1, 16, 512>}]} {
    %c0 = arith.constant 0 : index
    %c0_0 = arith.constant 0 : index
    %0 = vector.load %arg1[%c0, %c0_0] : memref<2x512xf32, #tpu.memory_space<vmem>>, vector<1x512xf32>
    %c1 = arith.constant 1 : index
    %c0_1 = arith.constant 0 : index
    %1 = vector.load %arg1[%c1, %c0_1] : memref<2x512xf32, #tpu.memory_space<vmem>>, vector<1x512xf32>
    %c0_2 = arith.constant 0 : index
    %c0_3 = arith.constant 0 : index
    %c0_4 = arith.constant 0 : index
    %2 = vector.load %arg2[%c0_2, %c0_3, %c0_4] : memref<1x16x512xf32, #tpu.memory_space<vmem>>, vector<1x16x512xf32>
    %3 = vector.shape_cast %2 : vector<1x16x512xf32> to vector<16x512xf32>
    %4 = arith.mulf %3, %3 : vector<16x512xf32>
    %cst = arith.constant dense<0.000000e+00> : vector<512xf32>
    %5 = vector.multi_reduction <add>, %4, %cst [0] : vector<16x512xf32> to vector<512xf32>
    %6 = vector.shape_cast %5 : vector<512xf32> to vector<1x512xf32>
    %c32_i32 = arith.constant 32 : i32
    %7 = tpu.dynamic_rotate %6 by %c32_i32 dim 1 : vector<1x512xf32>, i32 -> vector<1x512xf32>
    %8 = arith.addf %6, %7 : vector<1x512xf32>
    %c64_i32 = arith.constant 64 : i32
    %9 = tpu.dynamic_rotate %8 by %c64_i32 dim 1 : vector<1x512xf32>, i32 -> vector<1x512xf32>
    %10 = arith.addf %8, %9 : vector<1x512xf32>
    %c128_i32 = arith.constant 128 : i32
    %11 = tpu.dynamic_rotate %10 by %c128_i32 dim 1 : vector<1x512xf32>, i32 -> vector<1x512xf32>
    %12 = arith.addf %10, %11 : vector<1x512xf32>
    %c256_i32 = arith.constant 256 : i32
    %13 = tpu.dynamic_rotate %12 by %c256_i32 dim 1 : vector<1x512xf32>, i32 -> vector<1x512xf32>
    %14 = arith.addf %12, %13 : vector<1x512xf32>
    %15 = math.sqrt %14 : vector<1x512xf32>
    %cst_5 = arith.constant dense<0.000000e+00> : vector<1xf32>
    %16 = vector.multi_reduction <add>, %15, %cst_5 [1] : vector<1x512xf32> to vector<1xf32>
    %17 = vector.shape_cast %16 : vector<1xf32> to vector<1x1xf32>
    %cst_6 = arith.constant 0.001953125 : f32
    %18 = vector.broadcast %cst_6 : f32 to vector<1x1xf32>
    %19 = arith.mulf %17, %18 : vector<1x1xf32>
    %cst_7 = arith.constant 9.99999997E-7 : f32
    %20 = vector.broadcast %cst_7 : f32 to vector<1x1xf32>
    %21 = arith.addf %19, %20 : vector<1x1xf32>
    %cst_8 = arith.constant 1.000000e+00 : f32
    %22 = vector.broadcast %cst_8 : f32 to vector<1x1xf32>
    %23 = arith.divf %22, %21 : vector<1x1xf32>
    %24 = arith.mulf %0, %15 : vector<1x512xf32>
    %25 = vector.broadcast %23 : vector<1x1xf32> to vector<1x512xf32>
    %26 = arith.mulf %24, %25 : vector<1x512xf32>
    %cst_9 = arith.constant 1.000000e+00 : f32
    %27 = vector.broadcast %cst_9 : f32 to vector<1x512xf32>
    %28 = arith.addf %26, %27 : vector<1x512xf32>
    %29 = vector.broadcast %28 : vector<1x512xf32> to vector<16x512xf32>
    %30 = arith.mulf %3, %29 : vector<16x512xf32>
    %31 = vector.broadcast %1 : vector<1x512xf32> to vector<16x512xf32>
    %32 = arith.addf %30, %31 : vector<16x512xf32>
    %c0_10 = arith.constant 0 : index
    %c0_11 = arith.constant 0 : index
    %c0_12 = arith.constant 0 : index
    %33 = vector.load %arg3[%c0_10, %c0_11, %c0_12] : memref<1x16x512xf32, #tpu.memory_space<vmem>>, vector<1x16x512xf32>
    %34 = vector.shape_cast %33 : vector<1x16x512xf32> to vector<16x512xf32>
    %35 = vector.shape_cast %32 : vector<16x512xf32> to vector<1x16x512xf32>
    tpu.vector_store %arg3[%c0_10, %c0_11, %c0_12], %35 {strides = array<i32>} : memref<1x16x512xf32, #tpu.memory_space<vmem>>, vector<1x16x512xf32>,
    return
  }
  func.func @transform_0(%arg0: i32) -> (i32, i32) {
    %c0_i32 = arith.constant 0 : i32
    %c0_i32_0 = arith.constant 0 : i32
    %c0_i32_1 = arith.constant 0 : i32
    return %c0_i32, %c0_i32_0 : i32, i32
  }
  func.func @transform_1(%arg0: i32) -> (i32, i32, i32) {
    %c0_i32 = arith.constant 0 : i32
    %c0_i32_0 = arith.constant 0 : i32
    %c0_i32_1 = arith.constant 0 : i32
    return %arg0, %c0_i32, %c0_i32_0 : i32, i32, i32
  }
  func.func @transform_2(%arg0: i32) -> (i32, i32, i32) {
    %c0_i32 = arith.constant 0 : i32
    %c0_i32_0 = arith.constant 0 : i32
    %c0_i32_1 = arith.constant 0 : i32
    return %arg0, %c0_i32, %c0_i32_0 : i32, i32, i32
  }
}

</mosaic_0001>

<llo_original>
// kernel: tpu_custom_call.1
$region0: #{tpu_custom_call.1}
  #allocation0 [shape = 'u32[]', space=smem, size = 0x4, offset = 0x4, fixed_abs, tag = 'smem constant byte address 0x4 - core index']
  #allocation1 [shape = 'u32[144,128]{1,0:T(1,128)}', space=vmem, size = 0x12000, scoped, tag = 'internal scratch']
  %s0 = inlined_call_operand.hbm [shape: f32[2,512], index: 0, kind: input, shape index: {}]
  %s1 = inlined_call_operand.hbm [shape: f32[2,16,512], index: 1, kind: input, shape index: {}]
  %s2 = inlined_call_operand.hbm [shape: f32[2,16,512], index: 2, kind: output, shape index: {}]
  %s3 = sld [smem:[#allocation0]]
  $region49: #{tpu_custom_call.1} parent=0
    _
  %s5 = ssub.s32 1, %s3
  %s6 = scalar_select 0, %s5, %s3
  $region1: #{tpu_custom_call.1} parent=0
    #allocation2 [shape = 'u8[4096]{0}', space=vmem, size = 0x1000, scoped, tag = 'input window, operand 0, single buffered']
    #allocation3 [shape = 's32[2]{0}', space=sflag, size = 0x8, scoped, tag = 'scoped memory for tpu_custom_call.1']
    #allocation4 [shape = 's32[2]{0}', space=sflag, size = 0x8, scoped, tag = 'scoped memory for tpu_custom_call.1']
    #allocation5 [shape = 'u8[65536]{0}', space=vmem, size = 0x10000, scoped, tag = 'input window, operand 1']
    #allocation6 [shape = 's32[2]{0}', space=sflag, size = 0x8, scoped, tag = 'scoped memory for tpu_custom_call.1']
    #allocation7 [shape = 'u8[65536]{0}', space=vmem, size = 0x10000, scoped, tag = 'output window, operand 0']
    %7 = vsyncpa [#allocation3], 0
    %8 = vsyncpa [#allocation6], 0
    %s9 = scalar_lea.sflag [#allocation6], 1
    %10 = vsyncpa %s9, 0
    %11 = vsyncpa [#allocation4], 0
    %s12 = scalar_lea.sflag [#allocation4], 1
    %13 = vsyncpa %s12, 0
    loop: start=0, step=1, limit=4
    $region2: #{tpu_custom_call.1} parent=1 // loop_pre_header
      _
    $region3: #{tpu_custom_call.1} parent=1 // loop_header
      %s15 = sphi 0, %s19
      %p16 = scmp.ge.s32.totalorder %s15, 4
      %s23 = sphi 0, %s23
      %s25 = sphi 0, %s23
      %s26 = sphi 0, %s25
      %s40 = sphi 0, %s26
      %s46 = sphi 0, %s48
      %s49 = sphi 0, %s46
      %s50 = sphi 0, %s49
      %s66 = sphi 0, %s50
      %s72 = sphi 0, %s74
      %s75 = sphi 0, %s72
      %s76 = sphi 0, %s75
      %s92 = sphi 0, %s76
    $region4: #{tpu_custom_call.1} parent=1 // loop_header_branch
      %18 = sbr.rel (%p16) target = $region8
    $region5: #{tpu_custom_call.1} parent=1 // loop_body
      %s20 = ssub.s32 %s15, 1
      %s21 = ssub.s32 %s15, 2
      %s22 = sadd.s32 %s15, 1
      %s24 = sadd.s32 %s23, 1
      %p27 = scmp.eq.s32.totalorder %s15, 1
      %p28 = scmp.ne.s32.totalorder %s23, %s25
      %p29 = scmp.eq.s32.totalorder %s15, 0
      %p30 = por %p28, %p29
      %p31 = scmp.ne.s32.totalorder %s23, %s25
      %p32 = scmp.eq.s32.totalorder %s20, 1
      %p33 = por %p31, %p32
      %p34 = scmp.ne.s32.totalorder %s25, %s26
      %p35 = scmp.eq.s32.totalorder %s20, 0
      %p36 = por %p34, %p35
      %p37 = scmp.ne.s32.totalorder %s25, %s26
      %p38 = scmp.eq.s32.totalorder %s21, 1
      %p39 = por %p37, %p38
      %p41 = scmp.ne.s32.totalorder %s26, %s40
      %p42 = scmp.eq.s32.totalorder %s21, 0
      %p43 = por %p41, %p42
      %s44 = ssub.s32 %s15, %s22
      %p45 = scmp.eq.s32.totalorder %s44, 0
      %s47 = sadd.s32 %s46, 1
      %s48 = scalar_select %p45, %s46, %s47
      %p51 = pneg %p45
      %p52 = scmp.eq.s32.totalorder %s15, 1
      %p53 = por %p51, %p52
      %p54 = scmp.ne.s32.totalorder %s46, %s49
      %p55 = scmp.eq.s32.totalorder %s15, 0
      %p56 = por %p54, %p55
      %p57 = scmp.ne.s32.totalorder %s46, %s49
      %p58 = scmp.eq.s32.totalorder %s20, 1
      %p59 = por %p57, %p58
      %p60 = scmp.ne.s32.totalorder %s49, %s50
      %p61 = scmp.eq.s32.totalorder %s20, 0
      %p62 = por %p60, %p61
      %p63 = scmp.ne.s32.totalorder %s49, %s50
      %p64 = scmp.eq.s32.totalorder %s21, 1
      %p65 = por %p63, %p64
      %p67 = scmp.ne.s32.totalorder %s50, %s66
      %p68 = scmp.eq.s32.totalorder %s21, 0
      %p69 = por %p67, %p68
      %s70 = ssub.s32 %s15, %s22
      %p71 = scmp.eq.s32.totalorder %s70, 0
      %s73 = sadd.s32 %s72, 1
      %s74 = scalar_select %p71, %s72, %s73
      %p77 = pneg %p71
      %p78 = scmp.eq.s32.totalorder %s15, 1
      %p79 = por %p77, %p78
      %p80 = scmp.ne.s32.totalorder %s72, %s75
      %p81 = scmp.eq.s32.totalorder %s15, 0
      %p82 = por %p80, %p81
      %p83 = scmp.ne.s32.totalorder %s72, %s75
      %p84 = scmp.eq.s32.totalorder %s20, 1
      %p85 = por %p83, %p84
      %p86 = scmp.ne.s32.totalorder %s75, %s76
      %p87 = scmp.eq.s32.totalorder %s20, 0
      %p88 = por %p86, %p87
      %p89 = scmp.ne.s32.totalorder %s75, %s76
      %p90 = scmp.eq.s32.totalorder %s21, 1
      %p91 = por %p89, %p90
      %p93 = scmp.ne.s32.totalorder %s76, %s92
      %p94 = scmp.eq.s32.totalorder %s21, 0
      %p95 = por %p93, %p94
      %p96 = scmp.le.s32.totalorder 1, %s15
      %p97 = scmp.lt.s32.totalorder %s15, 3
      %p98 = pnand %p96, %p97
      %p99 = pneg %p98
      // Predicated region
      $region9: #{tpu_custom_call.1} parent=5 // pred_check
        _
      $region10: #{tpu_custom_call.1} parent=5 // pred_check_branch
        %101 = sbr.rel (%p98) target = $region12
      $region11: #{tpu_custom_call.1} parent=5 // pred_region
        %s102 = ssub.s32 %s15, 1
        // Predicated region
        $region13: #{tpu_custom_call.1} parent=11 // pred_check
          %p103 = pneg %p36
        $region14: #{tpu_custom_call.1} parent=11 // pred_check_branch
          %105 = sbr.rel (%p103) target = $region16
        $region15: #{tpu_custom_call.1} parent=11 // pred_region
          %s107 = ssub.s32 128, 128
          %108 = vsyncadd [#allocation3], %s107
          %s110 = sshll.u32 [#allocation2], 4
          %s111 = int_to_ptr.vmem [resolvable:$true] %s110
          %113 = dma.hbm_to_vmem [thread:$0]  %s0, 128, %s111, [#allocation3]
        $region16: #{tpu_custom_call.1} parent=11 // pred_fallthru
          _
      $region12: #{tpu_custom_call.1} parent=5 // pred_fallthru
        _
      %p114 = scmp.lt.s32.totalorder %s15, 2
      // Predicated region
      $region17: #{tpu_custom_call.1} parent=5 // pred_check
        %p115 = pneg %p114
      $region18: #{tpu_custom_call.1} parent=5 // pred_check_branch
        %117 = sbr.rel (%p115) target = $region20
      $region19: #{tpu_custom_call.1} parent=5 // pred_region
        // Predicated region
        $region21: #{tpu_custom_call.1} parent=19 // pred_check
          %p118 = pneg %p56
        $region22: #{tpu_custom_call.1} parent=19 // pred_check_branch
          %120 = sbr.rel (%p118) target = $region24
        $region23: #{tpu_custom_call.1} parent=19 // pred_region
          %s121 = sand.u32 %s46, 1
          %s122 = scalar_lea.sflag [#allocation6], %s121
          %s123 = sand.u32 %s46, 1
          %s124 = smul.addr %s123, 64
          %s125 = scalar_lea.vmem [#allocation5], %s124
          %s127 = ssub.s32 1024, 1024
          %128 = vsyncadd %s122, %s127
          %s129 = smul.addr %s15, 8
          %s130 = smul.addr %s129, 128
          %s131 = scalar_lea.hbm %s1, %s130
          %s132 = sshll.u32 %s125, 4
          %s133 = int_to_ptr.vmem [resolvable:$true] %s132
          %138 = dma.hbm_to_vmem [thread:$0]  %s131, 1024, %s133, %s122, 512, 512, 32
        $region24: #{tpu_custom_call.1} parent=19 // pred_fallthru
          _
      $region20: #{tpu_custom_call.1} parent=5 // pred_fallthru
        _
      %p139 = scmp.le.s32.totalorder 1, %s15
      %p140 = scmp.lt.s32.totalorder %s15, 3
      %p141 = pnand %p139, %p140
      %p142 = pneg %p141
      // Predicated region
      $region25: #{tpu_custom_call.1} parent=5 // pred_check
        _
      $region26: #{tpu_custom_call.1} parent=5 // pred_check_branch
        %144 = sbr.rel (%p141) target = $region28
      $region27: #{tpu_custom_call.1} parent=5 // pred_region
        %s145 = ssub.s32 %s15, 1
        // Predicated region
        $region29: #{tpu_custom_call.1} parent=27 // pred_check
          %p146 = pneg %p36
        $region30: #{tpu_custom_call.1} parent=27 // pred_check_branch
          %148 = sbr.rel (%p146) target = $region32
        $region31: #{tpu_custom_call.1} parent=27 // pred_region
          %149 = dma.done [#allocation3], 128
        $region32: #{tpu_custom_call.1} parent=27 // pred_fallthru
          _
        %s150 = sand.u32 %s49, 1
        %s151 = scalar_lea.sflag [#allocation6], %s150
        %s152 = sand.u32 %s49, 1
        %s153 = smul.addr %s152, 64
        %s154 = scalar_lea.vmem [#allocation5], %s153
        // Predicated region
        $region33: #{tpu_custom_call.1} parent=27 // pred_check
          %p155 = pneg %p62
        $region34: #{tpu_custom_call.1} parent=27 // pred_check_branch
          %157 = sbr.rel (%p155) target = $region36
        $region35: #{tpu_custom_call.1} parent=27 // pred_region
          %158 = dma.done %s151, 1024
        $region36: #{tpu_custom_call.1} parent=27 // pred_fallthru
          _
        %p159 = pneg %p36
        %p160 = pneg %p33
        %s161 = sand.u32 %s49, 1
        %s162 = scalar_lea.sflag [#allocation6], %s161
        %s163 = sand.u32 %s49, 1
        %s164 = smul.addr %s163, 64
        %s165 = scalar_lea.vmem [#allocation5], %s164
        %p166 = pneg %p62
        %p167 = pneg %p59
        %p168 = pneg %p88
        %p169 = pneg %p85
        %s170 = sand.u32 %s75, 1
        %s171 = scalar_lea.sflag [#allocation4], %s170
        %s172 = sand.u32 %s75, 1
        %s173 = smul.addr %s172, 64
        %s174 = scalar_lea.vmem [#allocation7], %s173
        %v175 = vld [vmem:[#allocation2] ss:$2 sm:$0xf]
        %s176 = scalar_lea.vmem [#allocation2], 1
        %v177 = vld [vmem:[%s176] ss:$2 sm:$0xf]
        %v178 = vld [vmem:[%s154] sm:$0xff]
        %v179 = vld [vmem:[%s154 + $0x8] sm:$0xff]
        %v180 = vld [vmem:[%s154 + $0x10] sm:$0xff]
        %v181 = vld [vmem:[%s154 + $0x18] sm:$0xff]
        %v182 = vld [vmem:[%s154 + $0x20] sm:$0xff]
        %v183 = vld [vmem:[%s154 + $0x28] sm:$0xff]
        %v184 = vld [vmem:[%s154 + $0x30] sm:$0xff]
        %v185 = vld [vmem:[%s154 + $0x38] sm:$0xff]
        %v186 = vmul.f32 %v178, %v178
        %v187 = vmul.f32 %v179, %v179
        %v188 = vmul.f32 %v180, %v180
        %v189 = vmul.f32 %v181, %v181
        %v190 = vmul.f32 %v182, %v182
        %v191 = vmul.f32 %v183, %v183
        %v192 = vmul.f32 %v184, %v184
        %v193 = vmul.f32 %v185, %v185
        %v194 = vadd.f32 %v186, %v190
        %v195 = vrot.slane %v194, 4
        %v196 = vadd.f32 %v194, %v195
        %v197 = vrot.slane %v196, 2
        %v198 = vadd.f32 %v196, %v197
        %v199 = vrot.slane %v198, 1
        %v200 = vadd.f32 %v198, %v199
        %v201 = vadd.f32 %v187, %v191
        %v202 = vrot.slane %v201, 4
        %v203 = vadd.f32 %v201, %v202
        %v204 = vrot.slane %v203, 2
        %v205 = vadd.f32 %v203, %v204
        %v206 = vrot.slane %v205, 1
        %v207 = vadd.f32 %v205, %v206
        %v208 = vadd.f32 %v188, %v192
        %v209 = vrot.slane %v208, 4
        %v210 = vadd.f32 %v208, %v209
        %v211 = vrot.slane %v210, 2
        %v212 = vadd.f32 %v210, %v211
        %v213 = vrot.slane %v212, 1
        %v214 = vadd.f32 %v212, %v213
        %v215 = vadd.f32 %v189, %v193
        %v216 = vrot.slane %v215, 4
        %v217 = vadd.f32 %v215, %v216
        %v218 = vrot.slane %v217, 2
        %v219 = vadd.f32 %v217, %v218
        %v220 = vrot.slane %v219, 1
        %v221 = vadd.f32 %v219, %v220
        %222 = vrot.lane.b32.xlu0 %v200, 32
        %v223 = vpop.permute.xlu0 %222
        %224 = vrot.lane.b32.xlu0 %v207, 32
        %v225 = vpop.permute.xlu0 %224
        %226 = vrot.lane.b32.xlu0 %v214, 32
        %v227 = vpop.permute.xlu0 %226
        %228 = vrot.lane.b32.xlu0 %v221, 32
        %v229 = vpop.permute.xlu0 %228
        %v230 = vlaneseq
        %v231 = vand.u32 %v230, 127
        %vm232 = vcmp.lt.s32.totalorder %v231, 32
        %v233 = vsel %vm232, %v227, %v229
        %v234 = vsel %vm232, %v225, %v227
        %v235 = vsel %vm232, %v223, %v225
        %v236 = vsel %vm232, %v229, %v223
        %v237 = vadd.f32 %v200, %v236
        %v238 = vadd.f32 %v207, %v235
        %v239 = vadd.f32 %v214, %v234
        %v240 = vadd.f32 %v221, %v233
        %241 = vrot.lane.b32.xlu0 %v237, 64
        %v242 = vpop.permute.xlu0 %241
        %243 = vrot.lane.b32.xlu0 %v238, 64
        %v244 = vpop.permute.xlu0 %243
        %245 = vrot.lane.b32.xlu0 %v239, 64
        %v246 = vpop.permute.xlu0 %245
        %247 = vrot.lane.b32.xlu0 %v240, 64
        %v248 = vpop.permute.xlu0 %247
        %vm249 = vcmp.lt.s32.totalorder %v231, 64
        %v250 = vsel %vm249, %v246, %v248
        %v251 = vsel %vm249, %v244, %v246
        %v252 = vsel %vm249, %v242, %v244
        %v253 = vsel %vm249, %v248, %v242
        %v254 = vadd.f32 %v237, %v253
        %v255 = vadd.f32 %v238, %v252
        %v256 = vadd.f32 %v239, %v251
        %v257 = vadd.f32 %v240, %v250
        %v258 = vadd.f32 %v254, %v257
        %v259 = vadd.f32 %v255, %v254
        %v260 = vadd.f32 %v256, %v255
        %v261 = vadd.f32 %v257, %v256
        %v262 = vadd.f32 %v258, %v260
        %v263 = vadd.f32 %v259, %v261
        %v264 = vrsqrt.pop %v262
        %v265 = vmul.f32 %v262, %v264
        %vm266 = vcmp.eq.f32.partialorder %v262, inf
        %v267 = vsel %vm266, %v262, %v265
        %vm268 = vcmp.eq.f32.partialorder %v262, 0.0
        %v269 = vand.u32 %v262, 2147483648
        %v270 = vsel %vm268, %v269, %v267
        %v271 = vrsqrt.pop %v263
        %v272 = vmul.f32 %v263, %v271
        %vm273 = vcmp.eq.f32.partialorder %v263, inf
        %v274 = vsel %vm273, %v263, %v272
        %vm275 = vcmp.eq.f32.partialorder %v263, 0.0
        %v276 = vand.u32 %v263, 2147483648
        %v277 = vsel %vm275, %v276, %v274
        %vm278 = vcmask 1040384
        %v279 = vsel %vm278, %v270, 0.0
        %v280 = vsel %vm278, %v277, 0.0
        %v281 = vadd.f32 %v279, %v280
        %v282 = vadd.f32 %v281, %v279
        %v283 = vadd.f32 %v282, %v280
        %284 = vadd.xlane.f32.xlu0 %v283
        %v285 = vpop.xlane.xlu0 %284
        %v286 = vmul.f32 %v285, 0.001953125
        %v287 = vadd.f32 %v286, 1e-06
        %v288 = vrcp.pop %v287
        %v289 = vmul.f32 1.0, %v288
        %v292 = vcombine.low %v270, %v277
        %v294 = vunpack.c.l.s4 1966171168
        %v295 = vunpack.c.0.s8 %v294
        %v296 = vlaneseq
        %v297 = vshrl.u32 %v296, 7
        %v298 = vsub.s32 %v295, %v297
        %v299 = vrot.slane %v292, %v298
        %v300 = vcombine.low %v299, %v299
        %v302 = vunpack.c.l.s4 1966171168
        %v303 = vunpack.c.0.s8 %v302
        %v304 = vlaneseq
        %v305 = vshrl.u32 %v304, 7
        %v306 = vsub.s32 %v303, %v305
        %v307 = vrot.slane %v300, %v306
        %v309 = vmul.f32 %v175, %v307
        %v311 = vlaneseq
        %v312 = vshrl.u32 %v311, 7
        %v313 = vsub.s32 0, %v312
        %v314 = vrot.slane %v289, %v313
        %v316 = vmul.f32 %v309, %v314
        %v317 = vadd.f32 %v316, 1.0
        %v319 = vlaneseq
        %v320 = vshrl.u32 %v319, 7
        %v321 = vsub.s32 0, %v320
        %v322 = vrot.slane %v317, %v321
        %v323 = vlaneseq
        %v324 = vshrl.u32 %v323, 7
        %v325 = vsub.s32 1, %v324
        %v326 = vrot.slane %v317, %v325
        %v327 = vlaneseq
        %v328 = vshrl.u32 %v327, 7
        %v329 = vsub.s32 2, %v328
        %v330 = vrot.slane %v317, %v329
        %v331 = vlaneseq
        %v332 = vshrl.u32 %v331, 7
        %v333 = vsub.s32 3, %v332
        %v334 = vrot.slane %v317, %v333
        %v339 = vmul.f32 %v178, %v322
        %v340 = vmul.f32 %v179, %v326
        %v341 = vmul.f32 %v180, %v330
        %v342 = vmul.f32 %v181, %v334
        %v343 = vmul.f32 %v182, %v322
        %v344 = vmul.f32 %v183, %v326
        %v345 = vmul.f32 %v184, %v330
        %v346 = vmul.f32 %v185, %v334
        %v348 = vlaneseq
        %v349 = vshrl.u32 %v348, 7
        %v350 = vsub.s32 0, %v349
        %v351 = vrot.slane %v177, %v350
        %v352 = vlaneseq
        %v353 = vshrl.u32 %v352, 7
        %v354 = vsub.s32 1, %v353
        %v355 = vrot.slane %v177, %v354
        %v356 = vlaneseq
        %v357 = vshrl.u32 %v356, 7
        %v358 = vsub.s32 2, %v357
        %v359 = vrot.slane %v177, %v358
        %v360 = vlaneseq
        %v361 = vshrl.u32 %v360, 7
        %v362 = vsub.s32 3, %v361
        %v363 = vrot.slane %v177, %v362
        %v368 = vadd.f32 %v339, %v351
        %v369 = vadd.f32 %v340, %v355
        %v370 = vadd.f32 %v341, %v359
        %v371 = vadd.f32 %v342, %v363
        %v372 = vadd.f32 %v343, %v351
        %v373 = vadd.f32 %v344, %v355
        %v374 = vadd.f32 %v345, %v359
        %v375 = vadd.f32 %v346, %v363
        %376 = vst [vmem:[%s174] sm:$0xff] %v368
        %377 = vst [vmem:[%s174 + $0x8] sm:$0xff] %v369
        %378 = vst [vmem:[%s174 + $0x10] sm:$0xff] %v370
        %379 = vst [vmem:[%s174 + $0x18] sm:$0xff] %v371
        %380 = vst [vmem:[%s174 + $0x20] sm:$0xff] %v372
        %381 = vst [vmem:[%s174 + $0x28] sm:$0xff] %v373
        %382 = vst [vmem:[%s174 + $0x30] sm:$0xff] %v374
        %383 = vst [vmem:[%s174 + $0x38] sm:$0xff] %v375
        %s384 = sand.u32 %s75, 1
        %s385 = scalar_lea.sflag [#allocation4], %s384
        %s386 = sand.u32 %s75, 1
        %s387 = smul.addr %s386, 64
        %s388 = scalar_lea.vmem [#allocation7], %s387
        // Predicated region
        $region37: #{tpu_custom_call.1} parent=27 // pred_check
          %p389 = pneg %p85
        $region38: #{tpu_custom_call.1} parent=27 // pred_check_branch
          %391 = sbr.rel (%p389) target = $region40
        $region39: #{tpu_custom_call.1} parent=27 // pred_region
          %s393 = ssub.s32 1024, 1024
          %394 = vsyncadd %s385, %s393
          %s395 = smul.addr %s20, 8
          %s396 = smul.addr %s395, 128
          %s397 = scalar_lea.hbm %s2, %s396
          %s398 = sshll.u32 %s388, 4
          %s399 = int_to_ptr.vmem [resolvable:$true] %s398
          %404 = dma.vmem_to_hbm [thread:$0]  %s399, 1024, %s397, %s385, 512, 512, 32
        $region40: #{tpu_custom_call.1} parent=27 // pred_fallthru
          _
      $region28: #{tpu_custom_call.1} parent=5 // pred_fallthru
        _
      %p405 = scmp.le.s32.totalorder 2, %s15
      // Predicated region
      $region41: #{tpu_custom_call.1} parent=5 // pred_check
        %p406 = pneg %p405
      $region42: #{tpu_custom_call.1} parent=5 // pred_check_branch
        %408 = sbr.rel (%p406) target = $region44
      $region43: #{tpu_custom_call.1} parent=5 // pred_region
        %s409 = ssub.s32 %s15, 2
        // Predicated region
        $region45: #{tpu_custom_call.1} parent=43 // pred_check
          %p410 = pneg %p91
        $region46: #{tpu_custom_call.1} parent=43 // pred_check_branch
          %412 = sbr.rel (%p410) target = $region48
        $region47: #{tpu_custom_call.1} parent=43 // pred_region
          %s413 = sand.u32 %s76, 1
          %s414 = scalar_lea.sflag [#allocation4], %s413
          %s415 = sand.u32 %s76, 1
          %s416 = smul.addr %s415, 64
          %s417 = scalar_lea.vmem [#allocation7], %s416
          %418 = dma.done %s414, 1024
        $region48: #{tpu_custom_call.1} parent=43 // pred_fallthru
          _
      $region44: #{tpu_custom_call.1} parent=5 // pred_fallthru
        _
    $region6: #{tpu_custom_call.1} parent=1 // loop_footer
      %s19 = sadd.s32 1, %s15
    $region7: #{tpu_custom_call.1} parent=1 // loop_footer_branch
      %14 = sbr.rel target = $region3
    $region8: #{tpu_custom_call.1} parent=1 // loop_exit
      _
    %419 = vsyncpa [#allocation3], 1
    %s420 = scalar_lea.sflag [#allocation3], 1
    %421 = vsyncpa %s420, 1
    %422 = vsyncpa [#allocation6], 1
    %s423 = scalar_lea.sflag [#allocation6], 1
    %424 = vsyncpa %s423, 1
    %425 = vsyncpa [#allocation4], 1
    %s426 = scalar_lea.sflag [#allocation4], 1
    %427 = vsyncpa %s426, 1

</llo_original>
